<compile_context>
chip_gen: v5e
topology: v5e:2x2
jax: 0.10.0
libtpu: 0.0.40
codegen_flags: <defaults>
</compile_context>

<pallas_src>
import functools

import jax
import jax.numpy as jnp
from jax.experimental import pallas as pl
from jax.experimental.pallas import tpu as pltpu


def _round_up(a, b):
    return (a + b - 1) // b * b


def _vmem_capacity_bytes():
    # Generation-aware VMEM capacity (v5e/v6e: 128 MiB, v7x: 64 MiB per core).
    try:
        return int(pltpu.get_tpu_info().vmem_capacity_bytes)
    except Exception:
        return 64 << 20  # conservative fallback = v7x per-core VMEM


def _linear_dyn_op_kernel(num_ops, dim, idx_ref, x_ref, w_ref, o_ref, xbig_ref):
    # idx_ref  : VMEM (TM, 1) int32  -- operator index per row of this tile
    # x_ref    : VMEM (TM, D)        -- embeddings tile
    # w_ref    : VMEM (K*D, D)       -- pre-transposed table, resident (1 copy)
    # o_ref    : VMEM (TM, D)        -- output tile
    # xbig_ref : VMEM (TM, K*D)      -- scratch: masked lane-packed LHS
    x = x_ref[...]
    idx = idx_ref[...]
    # Each row keeps x only in its own operator's D-wide slot; all other slots
    # are zero, so one deep matmul realizes the gathered per-row matmul.
    for k in range(num_ops):  # static unroll; num_ops is small
        xbig_ref[:, k * dim:(k + 1) * dim] = x * (idx == k).astype(x.dtype)
    o_ref[...] = jnp.dot(
        xbig_ref[...], w_ref[...], preferred_element_type=jnp.float32
    ).astype(o_ref.dtype)


@functools.partial(jax.jit, static_argnames=("compute_dtype",))
def linear_dynamic_operator(embeddings, operator_idxs, linear_transformations,
                            compute_dtype=None):
    """Pallas implementation of LinearDynamicOperator.forward.

    embeddings:             (..., dim) float
    operator_idxs:          (...)      int   (same leading shape as embeddings)
    linear_transformations: (num_operations, dim, dim) float
    compute_dtype:          optional lower-precision matmul dtype (e.g. bf16)
    returns:                (..., dim) float (dtype of `embeddings`)
    """
    *lead, dim = embeddings.shape
    num_ops, tdim0, tdim1 = linear_transformations.shape
    assert tdim0 == dim and tdim1 == dim, "transformation table shape mismatch"
    assert tuple(operator_idxs.shape) == tuple(lead), "operator_idxs shape mismatch"

    n = 1
    for d in lead:
        n *= d
    if n == 0:
        return jnp.zeros(embeddings.shape, embeddings.dtype)

    # One-time table transpose + flatten to the fused (K*D, D) layout so the
    # MXU contracts on the RHS sublane axis (no repeated in-kernel transpose).
    w = jnp.swapaxes(linear_transformations, 1, 2).reshape(num_ops * dim, dim)
    x = embeddings.reshape(n, dim)
    idx = operator_idxs.reshape(n, 1).astype(jnp.int32)
    if compute_dtype is not None:  # optional low-precision matmul path
        x = x.astype(compute_dtype)
        w = w.astype(compute_dtype)

    # Row tile: big enough to amortize the ~0.35us/step overhead, sublane
    # aligned, shrinking with dim (f32 acc / packed-LHS vreg & VMEM pressure).
    if dim <= 256:
        tm_cap = 512
    elif dim <= 1024:
        tm_cap = 256
    else:
        tm_cap = 128
    tm = min(tm_cap, _round_up(n, 8))
    # v7x megacore: the single "parallel" grid axis shards across 2 TCs, so
    # make sure there are at least 2 grid steps for medium-sized inputs.
    if n > 8 and _round_up(n, tm) // tm < 2:
        tm = _round_up((n + 1) // 2, 8)
    n_pad = _round_up(n, tm)

    if n_pad != n:
        # Padded rows are zero vectors -> all packed slots zero -> zero output,
        # sliced off below.
        x = jnp.pad(x, ((0, n_pad - n), (0, 0)))
        idx = jnp.pad(idx, ((0, n_pad - n), (0, 0)))

    # Generation-aware VMEM budget: resident table (single copy) +
    # double-buffered x/out tiles + lane-padded idx tiles + packed-LHS scratch.
    x_item = jnp.dtype(x.dtype).itemsize
    w_item = jnp.dtype(w.dtype).itemsize
    o_item = jnp.dtype(embeddings.dtype).itemsize
    table_bytes = num_ops * dim * dim * w_item
    io_bytes = 2 * tm * dim * (x_item + o_item)
    idx_bytes = 2 * tm * 128 * 4  # (TM, 1) int32 lane-pads to (TM, 128) in VMEM
    scratch_bytes = tm * num_ops * dim * x_item + tm * dim * 4
    needed = table_bytes + io_bytes + idx_bytes + scratch_bytes + (4 << 20)
    cap = max(_vmem_capacity_bytes() - (8 << 20), 32 << 20)
    vmem_limit = int(min(max(needed, 32 << 20), cap))

    kernel = functools.partial(_linear_dyn_op_kernel, num_ops, dim)
    out = pl.pallas_call(
        kernel,
        out_shape=jax.ShapeDtypeStruct((n_pad, dim), embeddings.dtype),
        grid=(n_pad // tm,),
        in_specs=[
            # Per-row operator indices for this tile.
            pl.BlockSpec((tm, 1), lambda i: (i, 0)),
            # Embedding row tile.
            pl.BlockSpec((tm, dim), lambda i: (i, 0)),
            # Whole pre-transposed table, untiled, resident in VMEM for the
            # duration of the kernel (single copy; no double-buffering).
            pl.BlockSpec(memory_space=pltpu.MemorySpace.VMEM),
        ],
        out_specs=pl.BlockSpec((tm, dim), lambda i: (i, 0)),
        scratch_shapes=[pltpu.VMEM((tm, num_ops * dim), x.dtype)],
        compiler_params=pltpu.CompilerParams(
            dimension_semantics=("parallel",),
            vmem_limit_bytes=vmem_limit,
        ),
    )(idx, x, w)

    return out[:n].reshape(*lead, dim)


def _reference(embeddings, operator_idxs, linear_transformations):
    # Pure-JAX reference mirroring the PyTorch forward.
    gathered = linear_transformations[operator_idxs]  # (..., dim, dim)
    return jnp.einsum("...ij,...j->...i", gathered, embeddings)


if __name__ == "__main__":
    key = jax.random.PRNGKey(0)
    k_emb, k_idx, k_pert, k_emb2, k_idx2 = jax.random.split(key, 5)

    dim = 32
    num_operations = 4

    # Module __init__ initializes each operator to the identity matrix; add a
    # small deterministic perturbation so the gather + matmul path is exercised.
    linear_transformations = (
        jnp.tile(jnp.eye(dim, dtype=jnp.float32), (num_operations, 1, 1))
        + 0.1 * jax.random.normal(k_pert, (num_operations, dim, dim), dtype=jnp.float32)
    )

    # Case 1: multiple leading dims, sublane-aligned row count.
    lead_shape = (2, 8)
    embeddings = jax.random.normal(k_emb, (*lead_shape, dim), dtype=jnp.float32)
    operator_idxs = jax.random.randint(k_idx, lead_shape, 0, num_operations, dtype=jnp.int32)
    out = jax.block_until_ready(
        linear_dynamic_operator(embeddings, operator_idxs, linear_transformations))
    ref = _reference(embeddings, operator_idxs, linear_transformations)
    assert out.shape == embeddings.shape
    assert jnp.allclose(out, ref, atol=1e-5, rtol=1e-5), "mismatch vs reference (case 1)"

    # Case 2: ragged row count (exercises padding / tile slicing / 2-step grid).
    lead_shape2 = (3, 5)
    embeddings2 = jax.random.normal(k_emb2, (*lead_shape2, dim), dtype=jnp.float32)
    operator_idxs2 = jax.random.randint(k_idx2, lead_shape2, 0, num_operations, dtype=jnp.int32)
    out2 = jax.block_until_ready(
        linear_dynamic_operator(embeddings2, operator_idxs2, linear_transformations))
    ref2 = _reference(embeddings2, operator_idxs2, linear_transformations)
    assert out2.shape == embeddings2.shape
    assert jnp.allclose(out2, ref2, atol=1e-5, rtol=1e-5), "mismatch vs reference (case 2)"

    print("KERNEL_OK")
</pallas_src>

<mosaic_0001>
module attributes {stable_mosaic.version = 11 : i64} {
  func.func @_linear_dyn_op_kernel(%arg0: i32, %arg1: memref<8x1xi32, #tpu.memory_space<vmem>>, %arg2: memref<8x32xf32, #tpu.memory_space<vmem>>, %arg3: memref<128x32xf32, #tpu.memory_space<vmem>>, %arg4: memref<8x32xf32, #tpu.memory_space<vmem>>, %arg5: memref<8x128xf32, #tpu.memory_space<vmem>>) attributes {dimension_semantics = [#tpu.dimension_semantics<parallel>], iteration_bounds = array<i64: 2>, scalar_prefetch = 0 : i64, scratch_operands = 1 : i64, tpu.core_type = #tpu.core_type<tc>, window_params = [{transform_indices = @transform_0, window_bounds = array<i64: 8, 1>}, {transform_indices = @transform_1, window_bounds = array<i64: 8, 32>}, {pipeline_mode = #tpu.pipeline_mode<synchronous>, transform_indices = @transform_2, window_bounds = array<i64: 128, 32>}, {transform_indices = @transform_3, window_bounds = array<i64: 8, 32>}]} {
    %c0 = arith.constant 0 : index
    %c0_0 = arith.constant 0 : index
    %0 = vector.load %arg2[%c0, %c0_0] : memref<8x32xf32, #tpu.memory_space<vmem>>, vector<8x32xf32>
    %c0_1 = arith.constant 0 : index
    %c0_2 = arith.constant 0 : index
    %1 = vector.load %arg1[%c0_1, %c0_2] : memref<8x1xi32, #tpu.memory_space<vmem>>, vector<8x1xi32>
    %c0_i32 = arith.constant 0 : i32
    %2 = vector.broadcast %c0_i32 : i32 to vector<8x1xi32>
    %3 = arith.cmpi eq, %1, %2 : vector<8x1xi32>
    %4 = arith.extui %3 : vector<8x1xi1> to vector<8x1xi32>
    %5 = arith.sitofp %4 : vector<8x1xi32> to vector<8x1xf32>
    %6 = vector.broadcast %5 : vector<8x1xf32> to vector<8x32xf32>
    %7 = arith.mulf %0, %6 : vector<8x32xf32>
    %c0_3 = arith.constant 0 : index
    %c0_4 = arith.constant 0 : index
    %8 = vector.load %arg5[%c0_3, %c0_4] : memref<8x128xf32, #tpu.memory_space<vmem>>, vector<8x32xf32>
    tpu.vector_store %arg5[%c0_3, %c0_4], %7 {strides = array<i32>} : memref<8x128xf32, #tpu.memory_space<vmem>>, vector<8x32xf32>,
    %c1_i32 = arith.constant 1 : i32
    %9 = vector.broadcast %c1_i32 : i32 to vector<8x1xi32>
    %10 = arith.cmpi eq, %1, %9 : vector<8x1xi32>
    %11 = arith.extui %10 : vector<8x1xi1> to vector<8x1xi32>
    %12 = arith.sitofp %11 : vector<8x1xi32> to vector<8x1xf32>
    %13 = vector.broadcast %12 : vector<8x1xf32> to vector<8x32xf32>
    %14 = arith.mulf %0, %13 : vector<8x32xf32>
    %c0_5 = arith.constant 0 : index
    %c32 = arith.constant 32 : index
    %15 = vector.load %arg5[%c0_5, %c32] : memref<8x128xf32, #tpu.memory_space<vmem>>, vector<8x32xf32>
    tpu.vector_store %arg5[%c0_5, %c32], %14 {strides = array<i32>} : memref<8x128xf32, #tpu.memory_space<vmem>>, vector<8x32xf32>,
    %c2_i32 = arith.constant 2 : i32
    %16 = vector.broadcast %c2_i32 : i32 to vector<8x1xi32>
    %17 = arith.cmpi eq, %1, %16 : vector<8x1xi32>
    %18 = arith.extui %17 : vector<8x1xi1> to vector<8x1xi32>
    %19 = arith.sitofp %18 : vector<8x1xi32> to vector<8x1xf32>
    %20 = vector.broadcast %19 : vector<8x1xf32> to vector<8x32xf32>
    %21 = arith.mulf %0, %20 : vector<8x32xf32>
    %c0_6 = arith.constant 0 : index
    %c64 = arith.constant 64 : index
    %22 = vector.load %arg5[%c0_6, %c64] : memref<8x128xf32, #tpu.memory_space<vmem>>, vector<8x32xf32>
    tpu.vector_store %arg5[%c0_6, %c64], %21 {strides = array<i32>} : memref<8x128xf32, #tpu.memory_space<vmem>>, vector<8x32xf32>,
    %c3_i32 = arith.constant 3 : i32
    %23 = vector.broadcast %c3_i32 : i32 to vector<8x1xi32>
    %24 = arith.cmpi eq, %1, %23 : vector<8x1xi32>
    %25 = arith.extui %24 : vector<8x1xi1> to vector<8x1xi32>
    %26 = arith.sitofp %25 : vector<8x1xi32> to vector<8x1xf32>
    %27 = vector.broadcast %26 : vector<8x1xf32> to vector<8x32xf32>
    %28 = arith.mulf %0, %27 : vector<8x32xf32>
    %c0_7 = arith.constant 0 : index
    %c96 = arith.constant 96 : index
    %29 = vector.load %arg5[%c0_7, %c96] : memref<8x128xf32, #tpu.memory_space<vmem>>, vector<8x32xf32>
    tpu.vector_store %arg5[%c0_7, %c96], %28 {strides = array<i32>} : memref<8x128xf32, #tpu.memory_space<vmem>>, vector<8x32xf32>,
    %c0_8 = arith.constant 0 : index
    %c0_9 = arith.constant 0 : index
    %30 = vector.load %arg5[%c0_8, %c0_9] : memref<8x128xf32, #tpu.memory_space<vmem>>, vector<8x128xf32>
    %c0_10 = arith.constant 0 : index
    %c0_11 = arith.constant 0 : index
    %31 = vector.load %arg3[%c0_10, %c0_11] : memref<128x32xf32, #tpu.memory_space<vmem>>, vector<128x32xf32>
    %cst = arith.constant dense<0.000000e+00> : vector<8x32xf32>
    %32 = tpu.matmul %30, %31, %cst {dimension_numbers = #tpu.dot_dimension_numbers<[1], [0], [0], [1], [0, 0, 1, 1], [], []>} : vector<8x128xf32>, vector<128x32xf32>, vector<8x32xf32> -> vector<8x32xf32>
    %c0_12 = arith.constant 0 : index
    %c0_13 = arith.constant 0 : index
    %33 = vector.load %arg4[%c0_12, %c0_13] : memref<8x32xf32, #tpu.memory_space<vmem>>, vector<8x32xf32>
    tpu.vector_store %arg4[%c0_12, %c0_13], %32 {strides = array<i32>} : memref<8x32xf32, #tpu.memory_space<vmem>>, vector<8x32xf32>,
    return
  }
  func.func @transform_0(%arg0: i32) -> (i32, i32) {
    %c0_i32 = arith.constant 0 : i32
    %c0_i32_0 = arith.constant 0 : i32
    return %arg0, %c0_i32 : i32, i32
  }
  func.func @transform_1(%arg0: i32) -> (i32, i32) {
    %c0_i32 = arith.constant 0 : i32
    %c0_i32_0 = arith.constant 0 : i32
    return %arg0, %c0_i32 : i32, i32
  }
  func.func @transform_2(%arg0: i32) -> (i32, i32) {
    %c0_i32 = arith.constant 0 : i32
    %c0_i32_0 = arith.constant 0 : i32
    %c0_i32_1 = arith.constant 0 : i32
    return %c0_i32, %c0_i32_0 : i32, i32
  }
  func.func @transform_3(%arg0: i32) -> (i32, i32) {
    %c0_i32 = arith.constant 0 : i32
    %c0_i32_0 = arith.constant 0 : i32
    return %arg0, %c0_i32 : i32, i32
  }
}

</mosaic_0001>

<llo_original>
// kernel: linear_dynamic_operator.1
$region0: #{linear_dynamic_operator.1}
  #allocation0 [shape = 'u32[]', space=smem, size = 0x4, offset = 0x4, fixed_abs, tag = 'smem constant byte address 0x4 - core index']
  #allocation1 [shape = 'u32[72,128]{1,0:T(1,128)}', space=vmem, size = 0x9000, scoped, tag = 'internal scratch']
  #allocation2 [shape = 'f32[8,128]{1,0:T(8,128)}', space=vmem, size = 0x1000, scoped, tag = 'scratch operand']
  %s0 = inlined_call_operand.vmem [shape: s32[16,1], index: 0, kind: input, shape index: {}]
  %s1 = inlined_call_operand.vmem [shape: f32[16,32], index: 1, kind: input, shape index: {}]
  %s2 = inlined_call_operand.vmem [shape: f32[128,32], index: 2, kind: input, shape index: {}]
  %s3 = inlined_call_operand.hbm [shape: f32[16,32], index: 3, kind: output, shape index: {}]
  %s4 = sld [smem:[#allocation0]]
  $region45: #{linear_dynamic_operator.1} parent=0
    _
  %s6 = ssub.s32 1, %s4
  %s7 = scalar_select 0, %s6, %s4
  $region1: #{linear_dynamic_operator.1} parent=0
    #allocation3 [shape = 'u8[8192]{0}', space=vmem, size = 0x2000, scoped, tag = 'output window, operand 0']
    #allocation4 [shape = 's32[2]{0}', space=sflag, size = 0x8, scoped, tag = 'scoped memory for linear_dynamic_operator.1']
    %8 = vsyncpa [#allocation4], 0
    %s9 = scalar_lea.sflag [#allocation4], 1
    %10 = vsyncpa %s9, 0
    loop: start=0, step=1, limit=4
    $region2: #{linear_dynamic_operator.1} parent=1 // loop_pre_header
      _
    $region3: #{linear_dynamic_operator.1} parent=1 // loop_header
      %s12 = sphi 0, %s16
      %p13 = scmp.ge.s32.totalorder %s12, 4
      %s22 = sphi 0, %s24
      %s25 = sphi 0, %s22
      %s26 = sphi 0, %s25
      %s42 = sphi 0, %s26
      %s48 = sphi 0, %s50
      %s51 = sphi 0, %s48
      %s52 = sphi 0, %s51
      %s68 = sphi 0, %s52
      %s72 = sphi 0, %s72
      %s74 = sphi 0, %s72
      %s75 = sphi 0, %s74
      %s89 = sphi 0, %s75
      %s95 = sphi 0, %s97
      %s98 = sphi 0, %s95
      %s99 = sphi 0, %s98
      %s115 = sphi 0, %s99
    $region4: #{linear_dynamic_operator.1} parent=1 // loop_header_branch
      %15 = sbr.rel (%p13) target = $region8
    $region5: #{linear_dynamic_operator.1} parent=1 // loop_body
      %s17 = ssub.s32 %s12, 1
      %s18 = ssub.s32 %s12, 2
      %s19 = sadd.s32 %s12, 1
      %s20 = ssub.s32 %s12, %s19
      %p21 = scmp.eq.s32.totalorder %s20, 0
      %s23 = sadd.s32 %s22, 1
      %s24 = scalar_select %p21, %s22, %s23
      %p27 = pneg %p21
      %p28 = scmp.eq.s32.totalorder %s12, 1
      %p29 = por %p27, %p28
      %p30 = scmp.ne.s32.totalorder %s22, %s25
      %p31 = scmp.eq.s32.totalorder %s12, 0
      %p32 = por %p30, %p31
      %p33 = scmp.ne.s32.totalorder %s22, %s25
      %p34 = scmp.eq.s32.totalorder %s17, 1
      %p35 = por %p33, %p34
      %p36 = scmp.ne.s32.totalorder %s25, %s26
      %p37 = scmp.eq.s32.totalorder %s17, 0
      %p38 = por %p36, %p37
      %p39 = scmp.ne.s32.totalorder %s25, %s26
      %p40 = scmp.eq.s32.totalorder %s18, 1
      %p41 = por %p39, %p40
      %p43 = scmp.ne.s32.totalorder %s26, %s42
      %p44 = scmp.eq.s32.totalorder %s18, 0
      %p45 = por %p43, %p44
      %s46 = ssub.s32 %s12, %s19
      %p47 = scmp.eq.s32.totalorder %s46, 0
      %s49 = sadd.s32 %s48, 1
      %s50 = scalar_select %p47, %s48, %s49
      %p53 = pneg %p47
      %p54 = scmp.eq.s32.totalorder %s12, 1
      %p55 = por %p53, %p54
      %p56 = scmp.ne.s32.totalorder %s48, %s51
      %p57 = scmp.eq.s32.totalorder %s12, 0
      %p58 = por %p56, %p57
      %p59 = scmp.ne.s32.totalorder %s48, %s51
      %p60 = scmp.eq.s32.totalorder %s17, 1
      %p61 = por %p59, %p60
      %p62 = scmp.ne.s32.totalorder %s51, %s52
      %p63 = scmp.eq.s32.totalorder %s17, 0
      %p64 = por %p62, %p63
      %p65 = scmp.ne.s32.totalorder %s51, %s52
      %p66 = scmp.eq.s32.totalorder %s18, 1
      %p67 = por %p65, %p66
      %p69 = scmp.ne.s32.totalorder %s52, %s68
      %p70 = scmp.eq.s32.totalorder %s18, 0
      %p71 = por %p69, %p70
      %s73 = sadd.s32 %s72, 1
      %p76 = scmp.eq.s32.totalorder %s12, 1
      %p77 = scmp.ne.s32.totalorder %s72, %s74
      %p78 = scmp.eq.s32.totalorder %s12, 0
      %p79 = por %p77, %p78
      %p80 = scmp.ne.s32.totalorder %s72, %s74
      %p81 = scmp.eq.s32.totalorder %s17, 1
      %p82 = por %p80, %p81
      %p83 = scmp.ne.s32.totalorder %s74, %s75
      %p84 = scmp.eq.s32.totalorder %s17, 0
      %p85 = por %p83, %p84
      %p86 = scmp.ne.s32.totalorder %s74, %s75
      %p87 = scmp.eq.s32.totalorder %s18, 1
      %p88 = por %p86, %p87
      %p90 = scmp.ne.s32.totalorder %s75, %s89
      %p91 = scmp.eq.s32.totalorder %s18, 0
      %p92 = por %p90, %p91
      %s93 = ssub.s32 %s12, %s19
      %p94 = scmp.eq.s32.totalorder %s93, 0
      %s96 = sadd.s32 %s95, 1
      %s97 = scalar_select %p94, %s95, %s96
      %p100 = pneg %p94
      %p101 = scmp.eq.s32.totalorder %s12, 1
      %p102 = por %p100, %p101
      %p103 = scmp.ne.s32.totalorder %s95, %s98
      %p104 = scmp.eq.s32.totalorder %s12, 0
      %p105 = por %p103, %p104
      %p106 = scmp.ne.s32.totalorder %s95, %s98
      %p107 = scmp.eq.s32.totalorder %s17, 1
      %p108 = por %p106, %p107
      %p109 = scmp.ne.s32.totalorder %s98, %s99
      %p110 = scmp.eq.s32.totalorder %s17, 0
      %p111 = por %p109, %p110
      %p112 = scmp.ne.s32.totalorder %s98, %s99
      %p113 = scmp.eq.s32.totalorder %s18, 1
      %p114 = por %p112, %p113
      %p116 = scmp.ne.s32.totalorder %s99, %s115
      %p117 = scmp.eq.s32.totalorder %s18, 0
      %p118 = por %p116, %p117
      %p119 = scmp.le.s32.totalorder 1, %s12
      %p120 = scmp.lt.s32.totalorder %s12, 3
      %p121 = pnand %p119, %p120
      %p122 = pneg %p121
      // Predicated region
      $region9: #{linear_dynamic_operator.1} parent=5 // pred_check
        _
      $region10: #{linear_dynamic_operator.1} parent=5 // pred_check_branch
        %124 = sbr.rel (%p121) target = $region12
      $region11: #{linear_dynamic_operator.1} parent=5 // pred_region
        %s125 = ssub.s32 %s12, 1
        // Predicated region
        $region13: #{linear_dynamic_operator.1} parent=11 // pred_check
          %p126 = pneg %p85
        $region14: #{linear_dynamic_operator.1} parent=11 // pred_check_branch
          %128 = sbr.rel (%p126) target = $region16
        $region15: #{linear_dynamic_operator.1} parent=11 // pred_region
          _
        $region16: #{linear_dynamic_operator.1} parent=11 // pred_fallthru
          _
      $region12: #{linear_dynamic_operator.1} parent=5 // pred_fallthru
        _
      %p129 = scmp.lt.s32.totalorder %s12, 2
      // Predicated region
      $region17: #{linear_dynamic_operator.1} parent=5 // pred_check
        %p130 = pneg %p129
      $region18: #{linear_dynamic_operator.1} parent=5 // pred_check_branch
        %132 = sbr.rel (%p130) target = $region20
      $region19: #{linear_dynamic_operator.1} parent=5 // pred_region
        // Predicated region
        $region21: #{linear_dynamic_operator.1} parent=19 // pred_check
          %p133 = pneg %p32
        $region22: #{linear_dynamic_operator.1} parent=19 // pred_check_branch
          %135 = sbr.rel (%p133) target = $region24
        $region23: #{linear_dynamic_operator.1} parent=19 // pred_region
          %p136 = scmp.lt.s32.totalorder %s12, 1
          %s137 = scalar_select %p136, %s12, 1
          %s138 = smul.addr %s137, 8
          %s139 = scalar_lea.vmem %s0, %s138
        $region24: #{linear_dynamic_operator.1} parent=19 // pred_fallthru
          _
        // Predicated region
        $region25: #{linear_dynamic_operator.1} parent=19 // pred_check
          %p140 = pneg %p58
        $region26: #{linear_dynamic_operator.1} parent=19 // pred_check_branch
          %142 = sbr.rel (%p140) target = $region28
        $region27: #{linear_dynamic_operator.1} parent=19 // pred_region
          %p143 = scmp.lt.s32.totalorder %s12, 1
          %s144 = scalar_select %p143, %s12, 1
          %s145 = smul.addr %s144, 8
          %s146 = scalar_lea.vmem %s1, %s145
        $region28: #{linear_dynamic_operator.1} parent=19 // pred_fallthru
          _
      $region20: #{linear_dynamic_operator.1} parent=5 // pred_fallthru
        _
      %p147 = scmp.le.s32.totalorder 1, %s12
      %p148 = scmp.lt.s32.totalorder %s12, 3
      %p149 = pnand %p147, %p148
      %p150 = pneg %p149
      // Predicated region
      $region29: #{linear_dynamic_operator.1} parent=5 // pred_check
        _
      $region30: #{linear_dynamic_operator.1} parent=5 // pred_check_branch
        %152 = sbr.rel (%p149) target = $region32
      $region31: #{linear_dynamic_operator.1} parent=5 // pred_region
        %s153 = ssub.s32 %s12, 1
        %p154 = scmp.lt.s32.totalorder %s17, 1
        %s155 = scalar_select %p154, %s17, 1
        %s156 = smul.addr %s155, 8
        %s157 = scalar_lea.vmem %s0, %s156
        %p158 = pneg %p38
        %p159 = pneg %p35
        %p160 = scmp.lt.s32.totalorder %s17, 1
        %s161 = scalar_select %p160, %s17, 1
        %s162 = smul.addr %s161, 8
        %s163 = scalar_lea.vmem %s1, %s162
        %p164 = pneg %p64
        %p165 = pneg %p61
        %p166 = pneg %p85
        %p167 = pneg %p82
        %p168 = pneg %p111
        %p169 = pneg %p108
        %s170 = sand.u32 %s98, 1
        %s171 = scalar_lea.sflag [#allocation4], %s170
        %s172 = sand.u32 %s98, 1
        %s173 = smul.addr %s172, 8
        %s174 = scalar_lea.vmem [#allocation3], %s173
        %p175 = scmp.lt.s32.totalorder %s17, 1
        %s176 = scalar_select %p175, %s17, 1
        %s177 = smul.addr %s176, 8
        %s178 = scalar_lea.vmem %s0, %s177
        %p179 = scmp.lt.s32.totalorder %s17, 1
        %s180 = scalar_select %p179, %s17, 1
        %s181 = smul.addr %s180, 8
        %s182 = scalar_lea.vmem %s1, %s181
        %v183 = vld [vmem:[%s182] sm:$0xff]
        %v184 = vld [vmem:[%s178] sm:$0xff]
        %vm185 = vcmp.eq.s32.totalorder %v184, 0
        %v186 = vsel %vm185, 1, 0
        %v187 = vcvt.s32.f32 %v186
        %189 = vset.pattern.permute.xlu0 0
        %190 = vperm.xlu0 %189, %v187
        %v191 = vpop.permute.xlu0 %190
        %v193 = vmul.f32 %v183, %v191
        %vm194 = vcmask 261120
        %195 = vst.msk [vmem:[#allocation2] sm:$0xff] %vm194, %v193
        %vm196 = vcmp.eq.s32.totalorder %v184, 1
        %v197 = vsel %vm196, 1, 0
        %v198 = vcvt.s32.f32 %v197
        %200 = vset.pattern.permute.xlu0 0
        %201 = vperm.xlu0 %200, %v198
        %v202 = vpop.permute.xlu0 %201
        %v204 = vmul.f32 %v183, %v202
        %206 = vrot.lane.b32.xlu0 %v204, 32
        %v207 = vpop.permute.xlu0 %206
        %vm209 = vcmask 523520
        %210 = vst.msk [vmem:[#allocation2] sm:$0xff] %vm209, %v207
        %vm211 = vcmp.eq.s32.totalorder %v184, 2
        %v212 = vsel %vm211, 1, 0
        %v213 = vcvt.s32.f32 %v212
        %215 = vset.pattern.permute.xlu0 0
        %216 = vperm.xlu0 %215, %v213
        %v217 = vpop.permute.xlu0 %216
        %v219 = vmul.f32 %v183, %v217
        %221 = vrot.lane.b32.xlu0 %v219, 64
        %v222 = vpop.permute.xlu0 %221
        %vm224 = vcmask 785920
        %225 = vst.msk [vmem:[#allocation2] sm:$0xff] %vm224, %v222
        %vm226 = vcmp.eq.s32.totalorder %v184, 3
        %v227 = vsel %vm226, 1, 0
        %v228 = vcvt.s32.f32 %v227
        %230 = vset.pattern.permute.xlu0 0
        %231 = vperm.xlu0 %230, %v228
        %v232 = vpop.permute.xlu0 %231
        %v234 = vmul.f32 %v183, %v232
        %236 = vrot.lane.b32.xlu0 %v234, 96
        %v237 = vpop.permute.xlu0 %236
        %vm239 = vcmask 1048320
        %240 = vst.msk [vmem:[#allocation2] sm:$0xff] %vm239, %v237
        %v241 = vld [vmem:[#allocation2] sm:$0xff]
        %v242 = vld [vmem:[%s2] sm:$0xff]
        %v243 = vld [vmem:[%s2 + $0x8] sm:$0xff]
        %v244 = vld [vmem:[%s2 + $0x10] sm:$0xff]
        %v245 = vld [vmem:[%s2 + $0x18] sm:$0xff]
        %v246 = vld [vmem:[%s2 + $0x20] sm:$0xff]
        %v247 = vld [vmem:[%s2 + $0x28] sm:$0xff]
        %v248 = vld [vmem:[%s2 + $0x30] sm:$0xff]
        %v249 = vld [vmem:[%s2 + $0x38] sm:$0xff]
        %v250 = vld [vmem:[%s2 + $0x40] sm:$0xff]
        %v251 = vld [vmem:[%s2 + $0x48] sm:$0xff]
        %v252 = vld [vmem:[%s2 + $0x50] sm:$0xff]
        %v253 = vld [vmem:[%s2 + $0x58] sm:$0xff]
        %v254 = vld [vmem:[%s2 + $0x60] sm:$0xff]
        %v255 = vld [vmem:[%s2 + $0x68] sm:$0xff]
        %v256 = vld [vmem:[%s2 + $0x70] sm:$0xff]
        %v257 = vld [vmem:[%s2 + $0x78] sm:$0xff]
        %258 = vmatpush.msra.mxu0 %v257
        %259 = vmatpush.msra.mxu0 %v256
        %260 = vmatpush.msra.mxu0 %v255
        %261 = vmatpush.msra.mxu0 %v254
        %262 = vmatpush.msra.mxu0 %v253
        %263 = vmatpush.msra.mxu0 %v252
        %264 = vmatpush.msra.mxu0 %v251
        %265 = vmatpush.msra.mxu0 %v250
        %266 = vmatpush.msra.mxu0 %v249
        %267 = vmatpush.msra.mxu0 %v248
        %268 = vmatpush.msra.mxu0 %v247
        %269 = vmatpush.msra.mxu0 %v246
        %270 = vmatpush.msra.mxu0 %v245
        %271 = vmatpush.msra.mxu0 %v244
        %272 = vmatpush.msra.mxu0 %v243
        %273 = vmatpush.msra.mxu0 %v242
        %274 = vmatmul.f32.gmra.mxu0 %v241
        %v275 = vpop.f32.mrf.mxu0
        %v276 = vadd.f32 0.0, %v275
        %277 = vdwg.mxu0
        %278 = vst.msk [vmem:[%s174] sm:$0xff] %vm194, %v276
        %s279 = sand.u32 %s98, 1
        %s280 = scalar_lea.sflag [#allocation4], %s279
        %s281 = sand.u32 %s98, 1
        %s282 = smul.addr %s281, 8
        %s283 = scalar_lea.vmem [#allocation3], %s282
        // Predicated region
        $region33: #{linear_dynamic_operator.1} parent=31 // pred_check
          %p284 = pneg %p108
        $region34: #{linear_dynamic_operator.1} parent=31 // pred_check_branch
          %286 = sbr.rel (%p284) target = $region36
        $region35: #{linear_dynamic_operator.1} parent=31 // pred_region
          %288 = vsyncadd %s280, 0
          %s289 = smul.addr %s17, 8
          %s290 = scalar_lea.hbm %s3, %s289
          %s292 = sshll.u32 %s283, 4
          %s293 = int_to_ptr.vmem [resolvable:$true] %s292
          %s294 = sshll.u32 %s290, 4
          %s295 = int_to_ptr.hbm [resolvable:$true] %s294
          %297 = dma.vmem_to_hbm [thread:$0]  %s293, 128, %s295, %s280
        $region36: #{linear_dynamic_operator.1} parent=31 // pred_fallthru
          _
      $region32: #{linear_dynamic_operator.1} parent=5 // pred_fallthru
        _
      %p298 = scmp.le.s32.totalorder 2, %s12
      // Predicated region
      $region37: #{linear_dynamic_operator.1} parent=5 // pred_check
        %p299 = pneg %p298
      $region38: #{linear_dynamic_operator.1} parent=5 // pred_check_branch
        %301 = sbr.rel (%p299) target = $region40
      $region39: #{linear_dynamic_operator.1} parent=5 // pred_region
        %s302 = ssub.s32 %s12, 2
        // Predicated region
        $region41: #{linear_dynamic_operator.1} parent=39 // pred_check
          %p303 = pneg %p114
        $region42: #{linear_dynamic_operator.1} parent=39 // pred_check_branch
          %305 = sbr.rel (%p303) target = $region44
        $region43: #{linear_dynamic_operator.1} parent=39 // pred_region
          %s306 = sand.u32 %s99, 1
          %s307 = scalar_lea.sflag [#allocation4], %s306
          %s308 = sand.u32 %s99, 1
          %s309 = smul.addr %s308, 8
          %s310 = scalar_lea.vmem [#allocation3], %s309
          %312 = dma.done %s307, 128
        $region44: #{linear_dynamic_operator.1} parent=39 // pred_fallthru
          _
      $region40: #{linear_dynamic_operator.1} parent=5 // pred_fallthru
        _
    $region6: #{linear_dynamic_operator.1} parent=1 // loop_footer
      %s16 = sadd.s32 1, %s12
    $region7: #{linear_dynamic_operator.1} parent=1 // loop_footer_branch
      %11 = sbr.rel target = $region3
    $region8: #{linear_dynamic_operator.1} parent=1 // loop_exit
      _
    %313 = vsyncpa [#allocation4], 1
    %s314 = scalar_lea.sflag [#allocation4], 1
    %315 = vsyncpa %s314, 1

</llo_original>
